<compile_context>
chip_gen: v6e
topology: v6e:2x2x1
jax: 0.10.0
libtpu: 0.0.40
codegen_flags: <defaults>
</compile_context>

<pallas_src>
import jax
import jax.numpy as jnp
from jax.experimental import pallas as pl
from jax.experimental.pallas import tpu as pltpu

_LANE = 128


def _round_up(a: int, b: int) -> int:
    return (a + b - 1) // b * b


def _round_down(a: int, b: int) -> int:
    return (a // b) * b


def _cdiv(a: int, b: int) -> int:
    return (a + b - 1) // b


def _make_kernel(d: int, tk: int, n_k: int):
    """Build the kernel closure over static shape parameters.

    refs:
      x_ref : (TM, TK) work-dtype tile of the batch (auto double-buffered)
      w_ref : (1, TK)  work-dtype weight slice
      b_ref : (1, 1)   f32 scalar bias in SMEM
      o_ref : (1, TM)  f32 lane-dense output row (same block across the k axis)
      acc   : (1, TM)  f32 VMEM accumulator scratch
    """
    ragged_k = (d % tk) != 0

    def kernel(x_ref, w_ref, b_ref, o_ref, acc_ref):
        k = pl.program_id(1)

        @pl.when(k == 0)
        def _():
            acc_ref[...] = jnp.zeros_like(acc_ref)

        x_tile = x_ref[...]
        if ragged_k:
            # Zero lanes past the true feature dim on the partial K block so
            # stale VMEM contents (possibly NaN bit patterns) cannot pollute
            # the reduction.  (w is zero-padded to d_pad in the wrapper.)
            col = jax.lax.broadcasted_iota(jnp.int32, x_tile.shape, 1)
            x_tile = jnp.where(k * tk + col < d, x_tile, jnp.zeros_like(x_tile))

        # w @ x^T -> (1, TM): lane-dense result so the final store is a
        # full-width unmasked vst.  The degenerate M=1 MXU shape has plenty of
        # slack because this kernel is HBM-bandwidth bound (~0.5 FLOP/byte).
        acc_ref[...] += jax.lax.dot_general(
            w_ref[...], x_tile,
            dimension_numbers=(((1,), (1,)), ((), ())),
            preferred_element_type=jnp.float32,
        )

        @pl.when(k == n_k - 1)
        def _():
            o_ref[...] = jax.nn.sigmoid(acc_ref[...] + b_ref[0, 0]).astype(o_ref.dtype)

    return kernel


def _choose_tiles(n: int, d: int, itemsize: int):
    """Pick (tm, tk): ~8 MiB per x buffer, multiples of 128 along both axes."""
    d_lane = _round_up(d, _LANE)               # VMEM pads the minor dim to 128
    target = 8 * 1024 * 1024                   # bytes per (double-buffered) x tile

    rows_full_d = _round_down(target // (d_lane * itemsize), _LANE)
    if rows_full_d >= _LANE:
        tk = d                                 # full feature dim fits per tile
        tm = min(rows_full_d, 8192)
    else:
        tm = _LANE                             # huge D: tile the reduction axis
        tk = min(d_lane, max(_LANE, _round_down(target // (tm * itemsize), _LANE)))

    tm = min(tm, _round_up(n, _LANE))          # never larger than the batch
    # Keep >= a few batch-axis grid steps so the "parallel" axis can split
    # across both TensorCores on v7x (no effect for tiny n).
    min_steps = min(8, _cdiv(n, _LANE))
    while min_steps > 1 and _cdiv(n, tm) < min_steps and tm > _LANE:
        tm = max(_LANE, _round_down(tm // 2, _LANE))
    return tm, tk


def logistic_regression_forward(x, weights, bias):
    """x: (N, D) f32/bf16; weights: (D,); bias: scalar/(1,) -> (N, 1) f32."""
    x = jnp.asarray(x)
    if x.dtype != jnp.bfloat16:
        x = x.astype(jnp.float32)              # keep bf16 inputs bf16
    work_dtype = x.dtype
    itemsize = jnp.dtype(work_dtype).itemsize

    n, d = x.shape
    w = jnp.asarray(weights, jnp.float32).reshape(1, -1)   # nn.Linear.weight: (1, D)
    assert w.shape[1] == d
    b = jnp.asarray(bias, jnp.float32).reshape(1, 1)       # scalar bias -> SMEM

    tm, tk = _choose_tiles(n, d, itemsize)
    n_blocks = _cdiv(n, tm)
    n_k = _cdiv(d, tk)
    n_pad = n_blocks * tm                      # only the tiny output is padded
    d_pad = n_k * tk

    # x itself is NOT padded or copied (it is the only large HBM stream);
    # only the tiny weight row gets zero-padded past D.
    if d_pad != d:
        w = jnp.pad(w, ((0, 0), (0, d_pad - d)))
    w = w.astype(work_dtype)

    kernel = _make_kernel(d, tk, n_k)

    out = pl.pallas_call(
        kernel,
        out_shape=jax.ShapeDtypeStruct((1, n_pad), jnp.float32),
        grid_spec=pltpu.PrefetchScalarGridSpec(
            num_scalar_prefetch=0,
            grid=(n_blocks, n_k),
            in_specs=[
                # x: one (TM, TK) tile per grid step (auto double-buffered);
                # ragged last row / feature blocks handled by edge clamping.
                pl.BlockSpec((tm, tk), lambda i, k: (i, k)),
                # weights: tiny (1, TK) slice per K step
                pl.BlockSpec((1, tk), lambda i, k: (0, k)),
                # bias: scalar in SMEM
                pl.BlockSpec(memory_space=pltpu.MemorySpace.SMEM),
            ],
            # lane-dense output: one (1, TM) row per batch block, resident
            # across the K (reduction) axis.
            out_specs=pl.BlockSpec((1, tm), lambda i, k: (0, i)),
            scratch_shapes=[pltpu.VMEM((1, tm), jnp.float32)],
        ),
        compiler_params=pltpu.CompilerParams(
            dimension_semantics=("parallel", "arbitrary"),
            vmem_limit_bytes=32 * 1024 * 1024,   # fits v7x (64 MiB physical) too
        ),
        cost_estimate=pl.CostEstimate(
            flops=2 * n * d,
            transcendentals=n,
            bytes_accessed=n * d * itemsize + d_pad * itemsize + n_pad * 4,
        ),
    )(x, w, b)

    return out[0, :n].reshape(n, 1).astype(jnp.float32)


if __name__ == "__main__":
    key = jax.random.PRNGKey(0)
    kx, kw, kb, kx2 = jax.random.split(key, 4)

    # Small demo shapes consistent with the module (arbitrary-length weights).
    N, D = 8, 32
    x = jax.random.normal(kx, (N, D), dtype=jnp.float32)
    weights = jax.random.normal(kw, (D,), dtype=jnp.float32)
    bias = jax.random.normal(kb, (1,), dtype=jnp.float32)

    out = jax.block_until_ready(logistic_regression_forward(x, weights, bias))
    ref = jax.nn.sigmoid(x @ weights.reshape(-1, 1) + bias.reshape(1, 1))
    assert out.shape == (N, 1)
    assert jnp.allclose(out, ref, atol=1e-5, rtol=1e-5)

    # Second check exercising the no-pad ragged batch path (N % tile != 0).
    N2 = 300
    x2 = jax.random.normal(kx2, (N2, D), dtype=jnp.float32)
    out2 = jax.block_until_ready(logistic_regression_forward(x2, weights, bias))
    ref2 = jax.nn.sigmoid(x2 @ weights.reshape(-1, 1) + bias.reshape(1, 1))
    assert out2.shape == (N2, 1)
    assert jnp.allclose(out2, ref2, atol=1e-5, rtol=1e-5)

    print("KERNEL_OK")
</pallas_src>

<mosaic_0001>
module attributes {stable_mosaic.version = 11 : i64} {
  func.func @kernel(%arg0: i32, %arg1: i32, %arg2: memref<128x32xf32, #tpu.memory_space<vmem>>, %arg3: memref<1x32xf32, #tpu.memory_space<vmem>>, %arg4: memref<1x1xf32, #tpu.memory_space<smem>>, %arg5: memref<1x128xf32, #tpu.memory_space<vmem>>, %arg6: memref<1x128xf32, #tpu.memory_space<vmem>>) attributes {dimension_semantics = [#tpu.dimension_semantics<parallel>, #tpu.dimension_semantics<arbitrary>], iteration_bounds = array<i64: 1, 1>, scalar_prefetch = 0 : i64, scratch_operands = 1 : i64, tpu.core_type = #tpu.core_type<tc>, window_params = [{transform_indices = @transform_0, window_bounds = array<i64: 128, 32>}, {transform_indices = @transform_1, window_bounds = array<i64: 1, 32>}, {transform_indices = @transform_2, window_bounds = array<i64: 1, 1>}, {transform_indices = @transform_3, window_bounds = array<i64: 1, 128>}]} {
    %c0_i32 = arith.constant 0 : i32
    %0 = arith.cmpi eq, %arg1, %c0_i32 : i32
    %1 = arith.extui %0 : i1 to i32
    %c0_i32_0 = arith.constant 0 : i32
    %2 = arith.cmpi ne, %1, %c0_i32_0 : i32
    scf.if %2 {
      %cst_10 = arith.constant 0.000000e+00 : f32
      %12 = vector.broadcast %cst_10 : f32 to vector<1x128xf32>
      %c0_11 = arith.constant 0 : index
      %c0_12 = arith.constant 0 : index
      %13 = vector.load %arg6[%c0_11, %c0_12] : memref<1x128xf32, #tpu.memory_space<vmem>>, vector<1x128xf32>
      tpu.vector_store %arg6[%c0_11, %c0_12], %12 {strides = array<i32>} : memref<1x128xf32, #tpu.memory_space<vmem>>, vector<1x128xf32>,
    } else {
    }
    %c0 = arith.constant 0 : index
    %c0_1 = arith.constant 0 : index
    %3 = vector.load %arg2[%c0, %c0_1] : memref<128x32xf32, #tpu.memory_space<vmem>>, vector<128x32xf32>
    %c0_2 = arith.constant 0 : index
    %c0_3 = arith.constant 0 : index
    %4 = vector.load %arg6[%c0_2, %c0_3] : memref<1x128xf32, #tpu.memory_space<vmem>>, vector<1x128xf32>
    %c0_4 = arith.constant 0 : index
    %c0_5 = arith.constant 0 : index
    %5 = vector.load %arg3[%c0_4, %c0_5] : memref<1x32xf32, #tpu.memory_space<vmem>>, vector<1x32xf32>
    %cst = arith.constant dense<0.000000e+00> : vector<1x128xf32>
    %6 = tpu.matmul %5, %3, %cst {dimension_numbers = #tpu.dot_dimension_numbers<[1], [1], [0], [0], [0, 0, 1, 0], [], []>} : vector<1x32xf32>, vector<128x32xf32>, vector<1x128xf32> -> vector<1x128xf32>
    %7 = arith.addf %4, %6 : vector<1x128xf32>
    %c0_6 = arith.constant 0 : index
    %c0_7 = arith.constant 0 : index
    %8 = vector.load %arg6[%c0_6, %c0_7] : memref<1x128xf32, #tpu.memory_space<vmem>>, vector<1x128xf32>
    tpu.vector_store %arg6[%c0_6, %c0_7], %7 {strides = array<i32>} : memref<1x128xf32, #tpu.memory_space<vmem>>, vector<1x128xf32>,
    %c0_i32_8 = arith.constant 0 : i32
    %9 = arith.cmpi eq, %arg1, %c0_i32_8 : i32
    %10 = arith.extui %9 : i1 to i32
    %c0_i32_9 = arith.constant 0 : i32
    %11 = arith.cmpi ne, %10, %c0_i32_9 : i32
    scf.if %11 {
      %c0_10 = arith.constant 0 : index
      %c0_11 = arith.constant 0 : index
      %12 = vector.load %arg6[%c0_10, %c0_11] : memref<1x128xf32, #tpu.memory_space<vmem>>, vector<1x128xf32>
      %c0_12 = arith.constant 0 : index
      %c0_13 = arith.constant 0 : index
      %13 = memref.load %arg4[%c0_12, %c0_13] : memref<1x1xf32, #tpu.memory_space<smem>>
      %14 = vector.broadcast %13 : f32 to vector<1x128xf32>
      %15 = arith.addf %12, %14 : vector<1x128xf32>
      %16 = arith.negf %15 : vector<1x128xf32>
      %17 = math.exp %16 : vector<1x128xf32>
      %cst_14 = arith.constant 1.000000e+00 : f32
      %18 = vector.broadcast %cst_14 : f32 to vector<1x128xf32>
      %19 = arith.addf %18, %17 : vector<1x128xf32>
      %20 = arith.divf %18, %19 : vector<1x128xf32>
      %c0_15 = arith.constant 0 : index
      %c0_16 = arith.constant 0 : index
      %21 = vector.load %arg5[%c0_15, %c0_16] : memref<1x128xf32, #tpu.memory_space<vmem>>, vector<1x128xf32>
      tpu.vector_store %arg5[%c0_15, %c0_16], %20 {strides = array<i32>} : memref<1x128xf32, #tpu.memory_space<vmem>>, vector<1x128xf32>,
    } else {
    }
    return
  }
  func.func @transform_0(%arg0: i32, %arg1: i32) -> (i32, i32) {
    %c0_i32 = arith.constant 0 : i32
    return %arg0, %arg1 : i32, i32
  }
  func.func @transform_1(%arg0: i32, %arg1: i32) -> (i32, i32) {
    %c0_i32 = arith.constant 0 : i32
    %c0_i32_0 = arith.constant 0 : i32
    return %c0_i32, %arg1 : i32, i32
  }
  func.func @transform_2(%arg0: i32, %arg1: i32) -> (i32, i32) {
    %c0_i32 = arith.constant 0 : i32
    %c0_i32_0 = arith.constant 0 : i32
    %c0_i32_1 = arith.constant 0 : i32
    return %c0_i32, %c0_i32_0 : i32, i32
  }
  func.func @transform_3(%arg0: i32, %arg1: i32) -> (i32, i32) {
    %c0_i32 = arith.constant 0 : i32
    %c0_i32_0 = arith.constant 0 : i32
    return %c0_i32, %arg0 : i32, i32
  }
}

</mosaic_0001>

<llo_original>
// kernel: tpu_custom_call.1
$region0: #{tpu_custom_call.1}
  #allocation0 [shape = 'u32[]', space=smem, size = 0x4, offset = 0x4, fixed_abs, tag = 'smem constant byte address 0x4 - core index']
  #allocation1 [shape = 'u32[144,128]{1,0:T(1,128)}', space=vmem, size = 0x12000, scoped, tag = 'internal scratch']
  #allocation2 [shape = 'f32[1,128]{1,0:T(1,128)}', space=vmem, size = 0x200, scoped, tag = 'scratch operand']
  #allocation3 [shape = 'f32[1,1]{1,0:T(1,128)S(6)}', space=smem, size = 0x200, scoped, tag = 'scoped memory for tpu_custom_call.1']
  %s0 = inlined_call_operand.hbm [shape: f32[8,32], index: 0, kind: input, shape index: {}]
  %s1 = inlined_call_operand.vmem [shape: f32[1,32], index: 1, kind: input, shape index: {}]
  %s2 = inlined_call_operand.<no memory space> [shape: f32[1,1], index: 2, kind: input, shape index: {}]
  %s3 = inlined_call_operand.hbm [shape: f32[1,128], index: 3, kind: output, shape index: {}]
  %s4 = sld [smem:[#allocation0]]
  $region34: #{tpu_custom_call.1} parent=0
    _
  %s6 = ssub.s32 1, %s4
  %s7 = scalar_select 0, %s6, %s4
  %8 = sst [smem:[#allocation3]] %s2
  $region1: #{tpu_custom_call.1} parent=0
    #allocation4 [shape = 'u8[65536]{0}', space=vmem, size = 0x10000, scoped, tag = 'input window, operand 0, single buffered']
    #allocation5 [shape = 's32[1]{0}', space=sflag, size = 0x4, scoped, tag = 'scoped memory for tpu_custom_call.1']
    #allocation6 [shape = 's32[1]{0}', space=sflag, size = 0x4, scoped, tag = 'scoped memory for tpu_custom_call.1']
    #allocation7 [shape = 'u8[512]{0}', space=vmem, size = 0x400, scoped, tag = 'output window, operand 0, single buffered']
    %9 = vsyncpa [#allocation5], 0
    %10 = vsyncpa [#allocation6], 0
    // Predicated region
    $region2: #{tpu_custom_call.1} parent=1 // pred_check
      _
    $region3: #{tpu_custom_call.1} parent=1 // pred_check_branch
      %12 = sbr.rel (0) target = $region5
    $region4: #{tpu_custom_call.1} parent=1 // pred_region
      %s14 = ssub.s32 2048, 128
      %15 = vsyncadd [#allocation5], %s14
      %s16 = sshll.u32 [#allocation4], 4
      %s17 = int_to_ptr.vmem [resolvable:$true] %s16
      %22 = dma.hbm_to_vmem [thread:$0]  %s0, 128, %s17, [#allocation5], 128, 128, 8
    $region5: #{tpu_custom_call.1} parent=1 // pred_fallthru
      _
    // Predicated region
    $region6: #{tpu_custom_call.1} parent=1 // pred_check
      _
    $region7: #{tpu_custom_call.1} parent=1 // pred_check_branch
      %24 = sbr.rel (0) target = $region9
    $region8: #{tpu_custom_call.1} parent=1 // pred_region
      _
    $region9: #{tpu_custom_call.1} parent=1 // pred_fallthru
      _
    // Predicated region
    $region10: #{tpu_custom_call.1} parent=1 // pred_check
      _
    $region11: #{tpu_custom_call.1} parent=1 // pred_check_branch
      %26 = sbr.rel (0) target = $region13
    $region12: #{tpu_custom_call.1} parent=1 // pred_region
      _
    $region13: #{tpu_custom_call.1} parent=1 // pred_fallthru
      _
    // Predicated region
    $region14: #{tpu_custom_call.1} parent=1 // pred_check
      _
    $region15: #{tpu_custom_call.1} parent=1 // pred_check_branch
      %28 = sbr.rel (0) target = $region17
    $region16: #{tpu_custom_call.1} parent=1 // pred_region
      %29 = dma.done [#allocation5], 2048
    $region17: #{tpu_custom_call.1} parent=1 // pred_fallthru
      _
    %p30 = scmp.eq.s32.totalorder 0, 0
    // Predicated region
    $region18: #{tpu_custom_call.1} parent=1 // pred_check
      %p31 = pneg %p30
    $region19: #{tpu_custom_call.1} parent=1 // pred_check_branch
      %33 = sbr.rel (%p31) target = $region21
    $region20: #{tpu_custom_call.1} parent=1 // pred_region
      %34 = vst [vmem:[#allocation2] sm:$0x1] 0.0
    $region21: #{tpu_custom_call.1} parent=1 // pred_fallthru
      _
    %v35 = vld [vmem:[#allocation4] sm:$0xff]
    %v36 = vld [vmem:[#allocation4 + $0x8] sm:$0xff]
    %v37 = vld [vmem:[#allocation4 + $0x10] sm:$0xff]
    %v38 = vld [vmem:[#allocation4 + $0x18] sm:$0xff]
    %v39 = vld [vmem:[#allocation4 + $0x20] sm:$0xff]
    %v40 = vld [vmem:[#allocation4 + $0x28] sm:$0xff]
    %v41 = vld [vmem:[#allocation4 + $0x30] sm:$0xff]
    %v42 = vld [vmem:[#allocation4 + $0x38] sm:$0xff]
    %v43 = vld [vmem:[#allocation4 + $0x40] sm:$0xff]
    %v44 = vld [vmem:[#allocation4 + $0x48] sm:$0xff]
    %v45 = vld [vmem:[#allocation4 + $0x50] sm:$0xff]
    %v46 = vld [vmem:[#allocation4 + $0x58] sm:$0xff]
    %v47 = vld [vmem:[#allocation4 + $0x60] sm:$0xff]
    %v48 = vld [vmem:[#allocation4 + $0x68] sm:$0xff]
    %v49 = vld [vmem:[#allocation4 + $0x70] sm:$0xff]
    %v50 = vld [vmem:[#allocation4 + $0x78] sm:$0xff]
    %v51 = vld [vmem:[#allocation2] sm:$0x1]
    %v52 = vld [vmem:[%s1] sm:$0x1]
    %vm53 = vcmask 261120
    %v55 = vsel %vm53, %v52, 0
    %v58 = vsel %vm53, %v35, 0
    %v61 = vsel %vm53, %v36, 0
    %v64 = vsel %vm53, %v37, 0
    %v67 = vsel %vm53, %v38, 0
    %v70 = vsel %vm53, %v39, 0
    %v73 = vsel %vm53, %v40, 0
    %v76 = vsel %vm53, %v41, 0
    %v79 = vsel %vm53, %v42, 0
    %v82 = vsel %vm53, %v43, 0
    %v85 = vsel %vm53, %v44, 0
    %v88 = vsel %vm53, %v45, 0
    %v91 = vsel %vm53, %v46, 0
    %v94 = vsel %vm53, %v47, 0
    %v97 = vsel %vm53, %v48, 0
    %v100 = vsel %vm53, %v49, 0
    %v103 = vsel %vm53, %v50, 0
    %105 = vmatprep.subr.mxu0 0.0
    %106 = vmatpush1.xpose.msra.mxu0 %v103
    %107 = vmatprep.subr.mxu0 0.0
    %108 = vmatpush1.xpose.msra.mxu0 %v100
    %109 = vmatprep.subr.mxu0 0.0
    %110 = vmatpush1.xpose.msra.mxu0 %v97
    %111 = vmatprep.subr.mxu0 0.0
    %112 = vmatpush1.xpose.msra.mxu0 %v94
    %113 = vmatprep.subr.mxu0 0.0
    %114 = vmatpush1.xpose.msra.mxu0 %v91
    %115 = vmatprep.subr.mxu0 0.0
    %116 = vmatpush1.xpose.msra.mxu0 %v88
    %117 = vmatprep.subr.mxu0 0.0
    %118 = vmatpush1.xpose.msra.mxu0 %v85
    %119 = vmatprep.subr.mxu0 0.0
    %120 = vmatpush1.xpose.msra.mxu0 %v82
    %121 = vmatprep.subr.mxu0 0.0
    %122 = vmatpush1.xpose.msra.mxu0 %v79
    %123 = vmatprep.subr.mxu0 0.0
    %124 = vmatpush1.xpose.msra.mxu0 %v76
    %125 = vmatprep.subr.mxu0 0.0
    %126 = vmatpush1.xpose.msra.mxu0 %v73
    %127 = vmatprep.subr.mxu0 0.0
    %128 = vmatpush1.xpose.msra.mxu0 %v70
    %129 = vmatprep.subr.mxu0 0.0
    %130 = vmatpush1.xpose.msra.mxu0 %v67
    %131 = vmatprep.subr.mxu0 0.0
    %132 = vmatpush1.xpose.msra.mxu0 %v64
    %133 = vmatprep.subr.mxu0 0.0
    %134 = vmatpush1.xpose.msra.mxu0 %v61
    %135 = vmatprep.subr.mxu0 0.0
    %136 = vmatpush1.xpose.msra.mxu0 %v58
    %137 = vmatprep.subr.mxu0 0.0
    %138 = vmatpush2.xpose.msra.mxu0 0.0
    %139 = vmatprep.subr.mxu0 0.0
    %140 = vmatpush2.xpose.msra.mxu0 0.0
    %141 = vmatprep.subr.mxu0 0.0
    %142 = vmatpush2.xpose.msra.mxu0 0.0
    %143 = vmatprep.subr.mxu0 0.0
    %144 = vmatpush2.xpose.msra.mxu0 0.0
    %145 = vmatprep.subr.mxu0 0.0
    %146 = vmatpush2.xpose.msra.mxu0 0.0
    %147 = vmatprep.subr.mxu0 0.0
    %148 = vmatpush2.xpose.msra.mxu0 0.0
    %149 = vmatprep.subr.mxu0 0.0
    %150 = vmatpush2.xpose.msra.mxu0 0.0
    %151 = vmatprep.subr.mxu0 0.0
    %152 = vmatpush2.xpose.msra.mxu0 0.0
    %153 = vmatprep.subr.mxu0 0.0
    %154 = vmatpush2.xpose.msra.mxu0 0.0
    %155 = vmatprep.subr.mxu0 0.0
    %156 = vmatpush2.xpose.msra.mxu0 0.0
    %157 = vmatprep.subr.mxu0 0.0
    %158 = vmatpush2.xpose.msra.mxu0 0.0
    %159 = vmatprep.subr.mxu0 0.0
    %160 = vmatpush2.xpose.msra.mxu0 0.0
    %161 = vmatprep.subr.mxu0 0.0
    %162 = vmatpush2.xpose.msra.mxu0 0.0
    %163 = vmatprep.subr.mxu0 0.0
    %164 = vmatpush2.xpose.msra.mxu0 0.0
    %165 = vmatprep.subr.mxu0 0.0
    %166 = vmatpush2.xpose.msra.mxu0 0.0
    %167 = vmatprep.subr.mxu0 0.0
    %168 = vmatpush2.xpose.msra.mxu0 0.0
    %169 = vmatprep.mubr.f32.mxu0 0.0
    %170 = vmatmul.mubr.f32.gmra.mxu0 %v55
    %v171 = vpop.f32.mrf.mxu0
    %v172 = vadd.f32 0.0, %v171
    %v173 = vpop.f32.mrf.mxu0
    %174 = vdwg.mxu0
    %v175 = vadd.f32 %v51, %v172
    %176 = vst [vmem:[#allocation2] sm:$0x1] %v175
    // Predicated region
    $region22: #{tpu_custom_call.1} parent=1 // pred_check
      %p177 = pneg %p30
    $region23: #{tpu_custom_call.1} parent=1 // pred_check_branch
      %179 = sbr.rel (%p177) target = $region25
    $region24: #{tpu_custom_call.1} parent=1 // pred_region
      %v180 = vld [vmem:[#allocation2] sm:$0x1]
      %s181 = sld [smem:[#allocation3]]
      %v182 = vstv %s181
      %v183 = vadd.f32 %v180, %v182
      %v184 = vxor.u32 %v183, 2147483648
      %v185 = vmul.f32 %v184, 1.442695
      %v186 = vpow.pop %v185
      %v187 = vadd.f32 %v186, 1.0
      %v188 = vrcp.pop %v187
      %v189 = vmul.f32 1.0, %v188
      %190 = vst [vmem:[#allocation7] sm:$0x1] %v189
    $region25: #{tpu_custom_call.1} parent=1 // pred_fallthru
      _
    // Predicated region
    $region26: #{tpu_custom_call.1} parent=1 // pred_check
      _
    $region27: #{tpu_custom_call.1} parent=1 // pred_check_branch
      %192 = sbr.rel (0) target = $region29
    $region28: #{tpu_custom_call.1} parent=1 // pred_region
      %s194 = ssub.s32 16, 16
      %195 = vsyncadd [#allocation6], %s194
      %s197 = sshll.u32 [#allocation7], 4
      %s198 = int_to_ptr.vmem [resolvable:$true] %s197
      %200 = dma.vmem_to_hbm [thread:$0]  %s198, 16, %s3, [#allocation6]
    $region29: #{tpu_custom_call.1} parent=1 // pred_fallthru
      _
    // Predicated region
    $region30: #{tpu_custom_call.1} parent=1 // pred_check
      _
    $region31: #{tpu_custom_call.1} parent=1 // pred_check_branch
      %202 = sbr.rel (0) target = $region33
    $region32: #{tpu_custom_call.1} parent=1 // pred_region
      %203 = dma.done [#allocation6], 16
    $region33: #{tpu_custom_call.1} parent=1 // pred_fallthru
      _
    %204 = vsyncpa [#allocation5], 1
    %205 = vsyncpa [#allocation6], 1

</llo_original>
